<compile_context>
chip_gen: v7x
topology: tpu7x:2x2x1
jax: 0.10.0
libtpu: 0.0.40
codegen_flags: <defaults>
</compile_context>

<pallas_src>
import functools

import jax
import jax.numpy as jnp
from jax.experimental import pallas as pl
from jax.experimental.pallas import tpu as pltpu


def _per_pixel_loss(x, lbl, *, eps, ignore_lb):
    """x: (C, T) f32 logits, lbl: (1, T) int32 labels -> ((1, T) loss, (1, T) valid)."""
    C, T = x.shape
    m = jnp.max(x, axis=0, keepdims=True)                     # (1, T)  cross-sublane (XLU)
    e = jnp.exp(x - m)                                        # (C, T)  EUP
    s = jnp.sum(e, axis=0, keepdims=True)                     # (1, T)  cross-sublane (XLU)
    inv = 1.0 / s                                             # exact reciprocal (matches softmax)
    pred = e * inv                                            # (C, T)
    cidx = jax.lax.broadcasted_iota(jnp.int32, (C, T), 0)     # channel index per sublane row
    tgt = (cidx == lbl).astype(jnp.float32)                   # one-hot; ignore_lb never matches
    d = pred - tgt
    ll = jnp.log(eps + 1.0 - d * d)                           # (C, T)  EUP
    loss = -jnp.sum(ll, axis=0, keepdims=True)                # (1, T)
    valid = lbl != ignore_lb
    return jnp.where(valid, loss, 0.0), valid


def _dfl_rows_kernel(logits_ref, label_ref, rows_ref, *, eps, ignore_lb):
    # logits_ref: (1, C, T) float, label_ref: (1, 1, T) int32, rows_ref: (1, 1, T) f32
    x = logits_ref[0].astype(jnp.float32)
    lbl = label_ref[0]
    loss, _ = _per_pixel_loss(x, lbl, eps=eps, ignore_lb=ignore_lb)
    rows_ref[0] = loss                                        # lane-dense per-pixel store


def _dfl_reduce_kernel(logits_ref, label_ref, part_ref, acc_ref, *, eps, ignore_lb):
    # part_ref: (1, 2, 128) f32 [row 0 = loss partial, row 1 = valid count]
    # acc_ref : (2, T) f32 VMEM scratch, persists across pixel tiles of one image
    t = pl.program_id(1)
    num_t = pl.num_programs(1)

    @pl.when(t == 0)
    def _():
        acc_ref[...] = jnp.zeros_like(acc_ref)

    x = logits_ref[0].astype(jnp.float32)
    lbl = label_ref[0]
    loss, valid = _per_pixel_loss(x, lbl, eps=eps, ignore_lb=ignore_lb)

    acc_ref[0:1, :] += loss
    acc_ref[1:2, :] += valid.astype(jnp.float32)

    # flush once per image: fold T lanes down to 128 with static slices + adds
    @pl.when(t == num_t - 1)
    def _():
        a = acc_ref[...]
        r = a[:, 0:128]
        for k in range(1, a.shape[1] // 128):
            r = r + a[:, k * 128:(k + 1) * 128]
        part_ref[0] = r


def dual_focal_loss(logits, label, *, ignore_lb=255, eps=1e-5,
                    reduction="mean", tile_p=4096):
    """logits: (N, C, H, W) float; label: (N, H, W) int. Matches the PyTorch module."""
    N, C, H, W = logits.shape
    HW = H * W

    # Lane-dense pixel tile: multiple of 128, as large as fits comfortably in scoped VMEM.
    max_cols = pl.cdiv(HW, 128) * 128
    tile_p = max(128, min((tile_p // 128) * 128, max_cols))

    def _vmem_bytes(tp):
        # double-buffered logits + label + per-pixel output, plus the (2, tp) accumulator
        return 2 * (C + 1 + 1) * tp * 4 + 2 * tp * 4

    while _vmem_bytes(tile_p) > (8 << 20) and tile_p > 128:
        tile_p = max(128, (tile_p // 2 // 128) * 128)

    HW_pad = pl.cdiv(HW, tile_p) * tile_p
    num_tiles = HW_pad // tile_p

    # Free reshapes only (no NCHW->NHWC transpose).  Padding (only when H*W is not a
    # tile multiple) uses ignore_lb labels so padded columns drop out everywhere.
    x = logits.reshape(N, C, HW)
    lbl = label.astype(jnp.int32).reshape(N, 1, HW)
    if HW_pad != HW:
        x = jnp.pad(x, ((0, 0), (0, 0), (0, HW_pad - HW)))
        lbl = jnp.pad(lbl, ((0, 0), (0, 0), (0, HW_pad - HW)),
                      constant_values=ignore_lb)

    in_specs = [
        pl.BlockSpec((1, C, tile_p), lambda n, t: (n, 0, t)),
        pl.BlockSpec((1, 1, tile_p), lambda n, t: (n, 0, t)),
    ]

    if reduction == "none":
        kernel = functools.partial(_dfl_rows_kernel, eps=eps, ignore_lb=ignore_lb)
        rows = pl.pallas_call(
            kernel,
            out_shape=jax.ShapeDtypeStruct((N, 1, HW_pad), jnp.float32),
            grid_spec=pltpu.PrefetchScalarGridSpec(
                num_scalar_prefetch=0,
                grid=(N, num_tiles),
                in_specs=in_specs,
                out_specs=pl.BlockSpec((1, 1, tile_p), lambda n, t: (n, 0, t)),
            ),
            compiler_params=pltpu.CompilerParams(
                dimension_semantics=("parallel", "parallel")),
        )(x, lbl)
        return rows[:, 0, :HW].reshape(N, H, W)

    if reduction not in ("mean", "sum"):
        raise ValueError(reduction)

    kernel = functools.partial(_dfl_reduce_kernel, eps=eps, ignore_lb=ignore_lb)
    partials = pl.pallas_call(
        kernel,
        out_shape=jax.ShapeDtypeStruct((N, 2, 128), jnp.float32),
        grid_spec=pltpu.PrefetchScalarGridSpec(
            num_scalar_prefetch=0,
            grid=(N, num_tiles),
            in_specs=in_specs,
            out_specs=pl.BlockSpec((1, 2, 128), lambda n, t: (n, 0, 0)),
            scratch_shapes=[pltpu.VMEM((2, tile_p), jnp.float32)],
        ),
        compiler_params=pltpu.CompilerParams(
            dimension_semantics=("parallel", "arbitrary")),
    )(x, lbl)

    loss_sum = jnp.sum(partials[:, 0, :])
    if reduction == "sum":
        return loss_sum
    n_valid = jnp.sum(partials[:, 1, :])
    return loss_sum / n_valid


def _reference(logits, label, ignore_lb=255, eps=1e-5, reduction="mean"):
    # pure-JAX reference mirroring the PyTorch forward
    ignore = label == ignore_lb
    n_valid = jnp.sum(~ignore)
    lbl = jnp.where(ignore, 0, label)
    onehot = jax.nn.one_hot(lbl, logits.shape[1], axis=1, dtype=logits.dtype)
    pred = jax.nn.softmax(logits, axis=1)
    loss = -jnp.sum(jnp.log(eps + 1.0 - (pred - onehot) ** 2), axis=1)
    loss = jnp.where(ignore, 0.0, loss)
    if reduction == "mean":
        return jnp.sum(loss) / n_valid
    elif reduction == "sum":
        return jnp.sum(loss)
    return loss


if __name__ == "__main__":
    key = jax.random.PRNGKey(0)
    k1, k2, k3 = jax.random.split(key, 3)

    N, C, H, W = 2, 4, 16, 16
    logits = jax.random.normal(k1, (N, C, H, W), dtype=jnp.float32)
    label = jax.random.randint(k2, (N, H, W), 0, C, dtype=jnp.int32)
    # sprinkle some ignore_lb=255 pixels
    ignore_mask = jax.random.uniform(k3, (N, H, W)) < 0.1
    label = jnp.where(ignore_mask, 255, label)

    out_mean = jax.block_until_ready(dual_focal_loss(logits, label, reduction="mean"))
    out_sum = jax.block_until_ready(dual_focal_loss(logits, label, reduction="sum"))
    out_none = jax.block_until_ready(dual_focal_loss(logits, label, reduction="none"))

    ref_mean = _reference(logits, label, reduction="mean")
    ref_sum = _reference(logits, label, reduction="sum")
    ref_none = _reference(logits, label, reduction="none")

    assert jnp.allclose(out_mean, ref_mean, rtol=1e-5, atol=1e-5), (out_mean, ref_mean)
    assert jnp.allclose(out_sum, ref_sum, rtol=1e-5, atol=1e-4), (out_sum, ref_sum)
    assert jnp.allclose(out_none, ref_none, rtol=1e-5, atol=2e-5), (
        float(jnp.max(jnp.abs(out_none - ref_none))),)

    print("KERNEL_OK")
</pallas_src>

<mosaic_0001>
module attributes {stable_mosaic.version = 11 : i64} {
  func.func @_dfl_reduce_kernel(%arg0: i32, %arg1: i32, %arg2: memref<1x4x256xf32, #tpu.memory_space<vmem>>, %arg3: memref<1x1x256xi32, #tpu.memory_space<vmem>>, %arg4: memref<1x2x128xf32, #tpu.memory_space<vmem>>, %arg5: memref<2x256xf32, #tpu.memory_space<vmem>>) attributes {dimension_semantics = [#tpu.dimension_semantics<parallel>, #tpu.dimension_semantics<arbitrary>], iteration_bounds = array<i64: 2, 1>, scalar_prefetch = 0 : i64, scratch_operands = 1 : i64, tpu.core_type = #tpu.core_type<tc>, window_params = [{transform_indices = @transform_0, window_bounds = array<i64: 1, 4, 256>}, {transform_indices = @transform_1, window_bounds = array<i64: 1, 1, 256>}, {transform_indices = @transform_2, window_bounds = array<i64: 1, 2, 128>}]} {
    %c0_i32 = arith.constant 0 : i32
    %0 = arith.cmpi eq, %arg1, %c0_i32 : i32
    %1 = arith.extui %0 : i1 to i32
    %c0_i32_0 = arith.constant 0 : i32
    %2 = arith.cmpi ne, %1, %c0_i32_0 : i32
    scf.if %2 {
      %cst_21 = arith.constant 0.000000e+00 : f32
      %47 = vector.broadcast %cst_21 : f32 to vector<2x256xf32>
      %c0_22 = arith.constant 0 : index
      %c0_23 = arith.constant 0 : index
      %48 = vector.load %arg5[%c0_22, %c0_23] : memref<2x256xf32, #tpu.memory_space<vmem>>, vector<2x256xf32>
      tpu.vector_store %arg5[%c0_22, %c0_23], %47 {strides = array<i32>} : memref<2x256xf32, #tpu.memory_space<vmem>>, vector<2x256xf32>,
    } else {
    }
    %c0 = arith.constant 0 : index
    %c0_1 = arith.constant 0 : index
    %c0_2 = arith.constant 0 : index
    %3 = vector.load %arg2[%c0, %c0_1, %c0_2] : memref<1x4x256xf32, #tpu.memory_space<vmem>>, vector<1x4x256xf32>
    %4 = vector.shape_cast %3 : vector<1x4x256xf32> to vector<4x256xf32>
    %c0_3 = arith.constant 0 : index
    %c0_4 = arith.constant 0 : index
    %c0_5 = arith.constant 0 : index
    %5 = vector.load %arg3[%c0_3, %c0_4, %c0_5] : memref<1x1x256xi32, #tpu.memory_space<vmem>>, vector<1x1x256xi32>
    %6 = vector.shape_cast %5 : vector<1x1x256xi32> to vector<1x256xi32>
    %cst = arith.constant dense<0xFF800000> : vector<256xf32>
    %7 = vector.multi_reduction <maximumf>, %4, %cst [0] : vector<4x256xf32> to vector<256xf32>
    %8 = vector.shape_cast %7 : vector<256xf32> to vector<1x256xf32>
    %9 = vector.broadcast %8 : vector<1x256xf32> to vector<4x256xf32>
    %10 = arith.subf %4, %9 : vector<4x256xf32>
    %11 = math.exp %10 : vector<4x256xf32>
    %cst_6 = arith.constant dense<0.000000e+00> : vector<256xf32>
    %12 = vector.multi_reduction <add>, %11, %cst_6 [0] : vector<4x256xf32> to vector<256xf32>
    %13 = vector.shape_cast %12 : vector<256xf32> to vector<1x256xf32>
    %cst_7 = arith.constant 1.000000e+00 : f32
    %14 = vector.broadcast %cst_7 : f32 to vector<1x256xf32>
    %15 = arith.divf %14, %13 : vector<1x256xf32>
    %16 = vector.broadcast %15 : vector<1x256xf32> to vector<4x256xf32>
    %17 = arith.mulf %11, %16 : vector<4x256xf32>
    %18 = tpu.iota {dimensions = array<i32: 0>} : vector<4x256xi32>
    %19 = vector.broadcast %6 : vector<1x256xi32> to vector<4x256xi32>
    %20 = arith.cmpi eq, %18, %19 : vector<4x256xi32>
    %21 = arith.extui %20 : vector<4x256xi1> to vector<4x256xi32>
    %22 = arith.sitofp %21 : vector<4x256xi32> to vector<4x256xf32>
    %23 = arith.subf %17, %22 : vector<4x256xf32>
    %24 = arith.mulf %23, %23 : vector<4x256xf32>
    %cst_8 = arith.constant 1.000010e+00 : f32
    %25 = vector.broadcast %cst_8 : f32 to vector<4x256xf32>
    %26 = arith.subf %25, %24 : vector<4x256xf32>
    %27 = math.log %26 : vector<4x256xf32>
    %cst_9 = arith.constant dense<0.000000e+00> : vector<256xf32>
    %28 = vector.multi_reduction <add>, %27, %cst_9 [0] : vector<4x256xf32> to vector<256xf32>
    %29 = vector.shape_cast %28 : vector<256xf32> to vector<1x256xf32>
    %cst_10 = arith.constant 0.000000e+00 : f32
    %30 = vector.broadcast %cst_10 : f32 to vector<1x256xf32>
    %31 = arith.subf %30, %29 : vector<1x256xf32>
    %c255_i32 = arith.constant 255 : i32
    %32 = vector.broadcast %c255_i32 : i32 to vector<1x256xi32>
    %33 = arith.cmpi ne, %6, %32 : vector<1x256xi32>
    %cst_11 = arith.constant 0.000000e+00 : f32
    %34 = vector.broadcast %cst_11 : f32 to vector<1x256xf32>
    %35 = arith.select %33, %31, %34 : vector<1x256xi1>, vector<1x256xf32>
    %c0_12 = arith.constant 0 : index
    %c0_13 = arith.constant 0 : index
    %36 = vector.load %arg5[%c0_12, %c0_13] : memref<2x256xf32, #tpu.memory_space<vmem>>, vector<1x256xf32>
    %37 = arith.addf %36, %35 : vector<1x256xf32>
    %c0_14 = arith.constant 0 : index
    %c0_15 = arith.constant 0 : index
    %38 = vector.load %arg5[%c0_14, %c0_15] : memref<2x256xf32, #tpu.memory_space<vmem>>, vector<1x256xf32>
    tpu.vector_store %arg5[%c0_14, %c0_15], %37 {strides = array<i32>} : memref<2x256xf32, #tpu.memory_space<vmem>>, vector<1x256xf32>,
    %c1 = arith.constant 1 : index
    %c0_16 = arith.constant 0 : index
    %39 = vector.load %arg5[%c1, %c0_16] : memref<2x256xf32, #tpu.memory_space<vmem>>, vector<1x256xf32>
    %40 = arith.extui %33 : vector<1x256xi1> to vector<1x256xi32>
    %41 = arith.sitofp %40 : vector<1x256xi32> to vector<1x256xf32>
    %42 = arith.addf %39, %41 : vector<1x256xf32>
    %c1_17 = arith.constant 1 : index
    %c0_18 = arith.constant 0 : index
    %43 = vector.load %arg5[%c1_17, %c0_18] : memref<2x256xf32, #tpu.memory_space<vmem>>, vector<1x256xf32>
    tpu.vector_store %arg5[%c1_17, %c0_18], %42 {strides = array<i32>} : memref<2x256xf32, #tpu.memory_space<vmem>>, vector<1x256xf32>,
    %c0_i32_19 = arith.constant 0 : i32
    %44 = arith.cmpi eq, %arg1, %c0_i32_19 : i32
    %45 = arith.extui %44 : i1 to i32
    %c0_i32_20 = arith.constant 0 : i32
    %46 = arith.cmpi ne, %45, %c0_i32_20 : i32
    scf.if %46 {
      %c0_21 = arith.constant 0 : index
      %c0_22 = arith.constant 0 : index
      %47 = vector.load %arg5[%c0_21, %c0_22] : memref<2x256xf32, #tpu.memory_space<vmem>>, vector<2x256xf32>
      %48 = vector.extract_strided_slice %47 {offsets = [0, 0], sizes = [2, 128], strides = [1, 1]} : vector<2x256xf32> to vector<2x128xf32>
      %49 = vector.extract_strided_slice %47 {offsets = [0, 128], sizes = [2, 128], strides = [1, 1]} : vector<2x256xf32> to vector<2x128xf32>
      %50 = arith.addf %48, %49 : vector<2x128xf32>
      %c0_23 = arith.constant 0 : index
      %c0_24 = arith.constant 0 : index
      %c0_25 = arith.constant 0 : index
      %51 = vector.load %arg4[%c0_23, %c0_24, %c0_25] : memref<1x2x128xf32, #tpu.memory_space<vmem>>, vector<1x2x128xf32>
      %52 = vector.shape_cast %51 : vector<1x2x128xf32> to vector<2x128xf32>
      %53 = vector.shape_cast %50 : vector<2x128xf32> to vector<1x2x128xf32>
      tpu.vector_store %arg4[%c0_23, %c0_24, %c0_25], %53 {strides = array<i32>} : memref<1x2x128xf32, #tpu.memory_space<vmem>>, vector<1x2x128xf32>,
    } else {
    }
    return
  }
  func.func @transform_0(%arg0: i32, %arg1: i32) -> (i32, i32, i32) {
    %c0_i32 = arith.constant 0 : i32
    %c0_i32_0 = arith.constant 0 : i32
    return %arg0, %c0_i32, %arg1 : i32, i32, i32
  }
  func.func @transform_1(%arg0: i32, %arg1: i32) -> (i32, i32, i32) {
    %c0_i32 = arith.constant 0 : i32
    %c0_i32_0 = arith.constant 0 : i32
    return %arg0, %c0_i32, %arg1 : i32, i32, i32
  }
  func.func @transform_2(%arg0: i32, %arg1: i32) -> (i32, i32, i32) {
    %c0_i32 = arith.constant 0 : i32
    %c0_i32_0 = arith.constant 0 : i32
    %c0_i32_1 = arith.constant 0 : i32
    return %arg0, %c0_i32, %c0_i32_0 : i32, i32, i32
  }
}

</mosaic_0001>

<llo_original>
// kernel: tpu_custom_call.1
$region0: #{tpu_custom_call.1}
  #allocation0 [shape = 'u32[]', space=smem, size = 0x4, offset = 0x4, fixed_abs, tag = 'smem constant byte address 0x4 - core index']
  #allocation1 [shape = 'u32[144,128]{1,0:T(1,128)}', space=vmem, size = 0x12000, scoped, tag = 'internal scratch']
  #allocation2 [shape = 'f32[2,256]{1,0:T(2,128)}', space=vmem, size = 0x800, scoped, tag = 'scratch operand']
  %s0 = inlined_call_operand.hbm [shape: f32[2,4,256], index: 0, kind: input, shape index: {}]
  %s1 = inlined_call_operand.hbm [shape: s32[2,1,256], index: 1, kind: input, shape index: {}]
  %s2 = inlined_call_operand.hbm [shape: f32[2,2,128], index: 2, kind: output, shape index: {}]
  %s3 = sld [smem:[#allocation0]]
  $region57: #{tpu_custom_call.1} parent=0
    _
  %s5 = ssub.s32 1, %s3
  %s6 = scalar_select 0, %s5, %s3
  $region1: #{tpu_custom_call.1} parent=0
    #allocation3 [shape = 'u8[8192]{0}', space=vmem, size = 0x2000, scoped, tag = 'input window, operand 0']
    #allocation4 [shape = 's32[2]{0}', space=sflag, size = 0x8, scoped, tag = 'scoped memory for tpu_custom_call.1']
    #allocation5 [shape = 's32[2]{0}', space=sflag, size = 0x8, scoped, tag = 'scoped memory for tpu_custom_call.1']
    #allocation6 [shape = 'u8[2048]{0}', space=vmem, size = 0x800, scoped, tag = 'input window, operand 1']
    #allocation7 [shape = 's32[2]{0}', space=sflag, size = 0x8, scoped, tag = 'scoped memory for tpu_custom_call.1']
    #allocation8 [shape = 'u8[2048]{0}', space=vmem, size = 0x800, scoped, tag = 'output window, operand 0']
    %7 = vsyncpa [#allocation4], 0
    %s8 = scalar_lea.sflag [#allocation4], 1
    %9 = vsyncpa %s8, 0
    %10 = vsyncpa [#allocation7], 0
    %s11 = scalar_lea.sflag [#allocation7], 1
    %12 = vsyncpa %s11, 0
    %13 = vsyncpa [#allocation5], 0
    %s14 = scalar_lea.sflag [#allocation5], 1
    %15 = vsyncpa %s14, 0
    loop: start=0, step=1, limit=4
    $region2: #{tpu_custom_call.1} parent=1 // loop_pre_header
      _
    $region3: #{tpu_custom_call.1} parent=1 // loop_header
      %s17 = sphi 0, %s21
      %p18 = scmp.ge.s32.totalorder %s17, 4
      %s24 = sphi 0, %s36
      %s25 = sphi 0, %s32
      %s26 = sphi 0, %s24
      %s27 = sphi 0, %s25
      %s28 = sphi 0, %s26
      %s29 = sphi 0, %s27
      %s41 = sphi 0, %s43
      %s44 = sphi 0, %s41
      %s45 = sphi 0, %s44
      %s61 = sphi 0, %s45
      %s69 = sphi 0, %s71
      %s72 = sphi 0, %s69
      %s73 = sphi 0, %s72
      %s89 = sphi 0, %s73
      %s95 = sphi 0, %s97
      %s98 = sphi 0, %s95
      %s99 = sphi 0, %s98
      %s115 = sphi 0, %s99
    $region4: #{tpu_custom_call.1} parent=1 // loop_header_branch
      %20 = sbr.rel (%p18) target = $region8
    $region5: #{tpu_custom_call.1} parent=1 // loop_body
      %s22 = ssub.s32 %s17, 1
      %s23 = ssub.s32 %s17, 2
      %s30 = sadd.s32 1, %s25
      %p31 = scmp.ge.s32.totalorder %s30, 1
      %s32 = scalar_select %p31, 0, %s30
      %s33 = sadd.s32 1, %s24
      %s34 = scalar_select %p31, %s33, %s24
      %p35 = scmp.ge.s32.totalorder %s34, 2
      %s36 = scalar_select %p35, 0, %s34
      %s37 = ssub.s32 %s24, %s36
      %s38 = ssub.s32 %s25, %s32
      %s39 = sor.u32 %s37, %s38
      %p40 = scmp.eq.s32.totalorder %s39, 0
      %s42 = sadd.s32 %s41, 1
      %s43 = scalar_select %p40, %s41, %s42
      %p46 = pneg %p40
      %p47 = scmp.eq.s32.totalorder %s17, 1
      %p48 = por %p46, %p47
      %p49 = scmp.ne.s32.totalorder %s41, %s44
      %p50 = scmp.eq.s32.totalorder %s17, 0
      %p51 = por %p49, %p50
      %p52 = scmp.ne.s32.totalorder %s41, %s44
      %p53 = scmp.eq.s32.totalorder %s22, 1
      %p54 = por %p52, %p53
      %p55 = scmp.ne.s32.totalorder %s44, %s45
      %p56 = scmp.eq.s32.totalorder %s22, 0
      %p57 = por %p55, %p56
      %p58 = scmp.ne.s32.totalorder %s44, %s45
      %p59 = scmp.eq.s32.totalorder %s23, 1
      %p60 = por %p58, %p59
      %p62 = scmp.ne.s32.totalorder %s45, %s61
      %p63 = scmp.eq.s32.totalorder %s23, 0
      %p64 = por %p62, %p63
      %s65 = ssub.s32 %s24, %s36
      %s66 = ssub.s32 %s25, %s32
      %s67 = sor.u32 %s65, %s66
      %p68 = scmp.eq.s32.totalorder %s67, 0
      %s70 = sadd.s32 %s69, 1
      %s71 = scalar_select %p68, %s69, %s70
      %p74 = pneg %p68
      %p75 = scmp.eq.s32.totalorder %s17, 1
      %p76 = por %p74, %p75
      %p77 = scmp.ne.s32.totalorder %s69, %s72
      %p78 = scmp.eq.s32.totalorder %s17, 0
      %p79 = por %p77, %p78
      %p80 = scmp.ne.s32.totalorder %s69, %s72
      %p81 = scmp.eq.s32.totalorder %s22, 1
      %p82 = por %p80, %p81
      %p83 = scmp.ne.s32.totalorder %s72, %s73
      %p84 = scmp.eq.s32.totalorder %s22, 0
      %p85 = por %p83, %p84
      %p86 = scmp.ne.s32.totalorder %s72, %s73
      %p87 = scmp.eq.s32.totalorder %s23, 1
      %p88 = por %p86, %p87
      %p90 = scmp.ne.s32.totalorder %s73, %s89
      %p91 = scmp.eq.s32.totalorder %s23, 0
      %p92 = por %p90, %p91
      %s93 = ssub.s32 %s24, %s36
      %p94 = scmp.eq.s32.totalorder %s93, 0
      %s96 = sadd.s32 %s95, 1
      %s97 = scalar_select %p94, %s95, %s96
      %p100 = pneg %p94
      %p101 = scmp.eq.s32.totalorder %s17, 1
      %p102 = por %p100, %p101
      %p103 = scmp.ne.s32.totalorder %s95, %s98
      %p104 = scmp.eq.s32.totalorder %s17, 0
      %p105 = por %p103, %p104
      %p106 = scmp.ne.s32.totalorder %s95, %s98
      %p107 = scmp.eq.s32.totalorder %s22, 1
      %p108 = por %p106, %p107
      %p109 = scmp.ne.s32.totalorder %s98, %s99
      %p110 = scmp.eq.s32.totalorder %s22, 0
      %p111 = por %p109, %p110
      %p112 = scmp.ne.s32.totalorder %s98, %s99
      %p113 = scmp.eq.s32.totalorder %s23, 1
      %p114 = por %p112, %p113
      %p116 = scmp.ne.s32.totalorder %s99, %s115
      %p117 = scmp.eq.s32.totalorder %s23, 0
      %p118 = por %p116, %p117
      %p119 = scmp.le.s32.totalorder 1, %s17
      %p120 = scmp.lt.s32.totalorder %s17, 3
      %p121 = pnand %p119, %p120
      %p122 = pneg %p121
      // Predicated region
      $region9: #{tpu_custom_call.1} parent=5 // pred_check
        _
      $region10: #{tpu_custom_call.1} parent=5 // pred_check_branch
        %124 = sbr.rel (%p121) target = $region12
      $region11: #{tpu_custom_call.1} parent=5 // pred_region
        %s125 = ssub.s32 %s17, 1
      $region12: #{tpu_custom_call.1} parent=5 // pred_fallthru
        _
      %p126 = scmp.lt.s32.totalorder %s17, 2
      // Predicated region
      $region13: #{tpu_custom_call.1} parent=5 // pred_check
        %p127 = pneg %p126
      $region14: #{tpu_custom_call.1} parent=5 // pred_check_branch
        %129 = sbr.rel (%p127) target = $region16
      $region15: #{tpu_custom_call.1} parent=5 // pred_region
        // Predicated region
        $region17: #{tpu_custom_call.1} parent=15 // pred_check
          %p130 = pneg %p51
        $region18: #{tpu_custom_call.1} parent=15 // pred_check_branch
          %132 = sbr.rel (%p130) target = $region20
        $region19: #{tpu_custom_call.1} parent=15 // pred_region
          %s133 = sand.u32 %s41, 1
          %s134 = scalar_lea.sflag [#allocation4], %s133
          %s135 = sand.u32 %s41, 1
          %s136 = smul.addr %s135, 8
          %s137 = scalar_lea.vmem [#allocation3], %s136
          %s138 = smul.u32 2, %s25
          %s140 = ssub.s32 128, 128
          %141 = vsyncadd %s134, %s140
          %s142 = smul.addr %s24, 2
          %s143 = sadd.s32 %s138, %s142
          %s144 = smul.addr %s143, 64
          %s145 = scalar_lea.hbm %s0, %s144
          %s147 = sshll.u32 %s137, 4
          %s148 = int_to_ptr.vmem [resolvable:$true] %s147
          %150 = dma.hbm_to_vmem [thread:$0]  %s145, 128, %s148, %s134
        $region20: #{tpu_custom_call.1} parent=15 // pred_fallthru
          _
        // Predicated region
        $region21: #{tpu_custom_call.1} parent=15 // pred_check
          %p151 = pneg %p79
        $region22: #{tpu_custom_call.1} parent=15 // pred_check_branch
          %153 = sbr.rel (%p151) target = $region24
        $region23: #{tpu_custom_call.1} parent=15 // pred_region
          %s154 = sand.u32 %s69, 1
          %s155 = scalar_lea.sflag [#allocation7], %s154
          %s156 = sand.u32 %s69, 1
          %s157 = smul.addr %s156, 2
          %s158 = scalar_lea.vmem [#allocation6], %s157
          %s159 = smul.u32 2, %s25
          %s161 = ssub.s32 32, 32
          %162 = vsyncadd %s155, %s161
          %s163 = smul.addr %s24, 2
          %s164 = sadd.s32 %s159, %s163
          %s165 = smul.addr %s164, 16
          %s166 = scalar_lea.hbm %s1, %s165
          %s168 = sshll.u32 %s158, 4
          %s169 = int_to_ptr.vmem [resolvable:$true] %s168
          %171 = dma.hbm_to_vmem [thread:$0]  %s166, 32, %s169, %s155
        $region24: #{tpu_custom_call.1} parent=15 // pred_fallthru
          _
      $region16: #{tpu_custom_call.1} parent=5 // pred_fallthru
        _
      %p172 = scmp.le.s32.totalorder 1, %s17
      %p173 = scmp.lt.s32.totalorder %s17, 3
      %p174 = pnand %p172, %p173
      %p175 = pneg %p174
      // Predicated region
      $region25: #{tpu_custom_call.1} parent=5 // pred_check
        _
      $region26: #{tpu_custom_call.1} parent=5 // pred_check_branch
        %177 = sbr.rel (%p174) target = $region28
      $region27: #{tpu_custom_call.1} parent=5 // pred_region
        %s178 = ssub.s32 %s17, 1
        %s179 = sand.u32 %s44, 1
        %s180 = scalar_lea.sflag [#allocation4], %s179
        %s181 = sand.u32 %s44, 1
        %s182 = smul.addr %s181, 8
        %s183 = scalar_lea.vmem [#allocation3], %s182
        // Predicated region
        $region29: #{tpu_custom_call.1} parent=27 // pred_check
          %p184 = pneg %p57
        $region30: #{tpu_custom_call.1} parent=27 // pred_check_branch
          %186 = sbr.rel (%p184) target = $region32
        $region31: #{tpu_custom_call.1} parent=27 // pred_region
          %187 = dma.done %s180, 128
        $region32: #{tpu_custom_call.1} parent=27 // pred_fallthru
          _
        %s188 = sand.u32 %s72, 1
        %s189 = scalar_lea.sflag [#allocation7], %s188
        %s190 = sand.u32 %s72, 1
        %s191 = smul.addr %s190, 2
        %s192 = scalar_lea.vmem [#allocation6], %s191
        // Predicated region
        $region33: #{tpu_custom_call.1} parent=27 // pred_check
          %p193 = pneg %p85
        $region34: #{tpu_custom_call.1} parent=27 // pred_check_branch
          %195 = sbr.rel (%p193) target = $region36
        $region35: #{tpu_custom_call.1} parent=27 // pred_region
          %196 = dma.done %s189, 32
        $region36: #{tpu_custom_call.1} parent=27 // pred_fallthru
          _
        %s197 = sand.u32 %s44, 1
        %s198 = scalar_lea.sflag [#allocation4], %s197
        %s199 = sand.u32 %s44, 1
        %s200 = smul.addr %s199, 8
        %s201 = scalar_lea.vmem [#allocation3], %s200
        %p202 = pneg %p57
        %p203 = pneg %p54
        %s204 = sand.u32 %s72, 1
        %s205 = scalar_lea.sflag [#allocation7], %s204
        %s206 = sand.u32 %s72, 1
        %s207 = smul.addr %s206, 2
        %s208 = scalar_lea.vmem [#allocation6], %s207
        %p209 = pneg %p85
        %p210 = pneg %p82
        %p211 = pneg %p111
        %p212 = pneg %p108
        %s213 = sand.u32 %s98, 1
        %s214 = scalar_lea.sflag [#allocation5], %s213
        %s215 = sand.u32 %s98, 1
        %s216 = smul.addr %s215, 2
        %s217 = scalar_lea.vmem [#allocation8], %s216
        %s218 = smul.u32 2, %s27
        %s219 = smul.u32 2, %s27
        %p220 = scmp.eq.s32.totalorder %s27, 0
        // Predicated region
        $region37: #{tpu_custom_call.1} parent=27 // pred_check
          %p221 = pneg %p220
        $region38: #{tpu_custom_call.1} parent=27 // pred_check_branch
          %223 = sbr.rel (%p221) target = $region40
        $region39: #{tpu_custom_call.1} parent=27 // pred_region
          %224 = vst [vmem:[#allocation2] sm:$0xf] 0.0
        $region40: #{tpu_custom_call.1} parent=27 // pred_fallthru
          _
        %v225 = vld [vmem:[%s183] sm:$0xff]
        %v226 = vld [vmem:[%s192] sm:$0x3]
        %v228 = vcombine.high %v225, %v225
        %vm230 = vcmask 1043456
        %v231 = vsel %vm230, %v225, -inf
        %v232 = vrot.slane %v231, 4
        %v233 = vmax.f32 %v231, %v232
        %v234 = vrot.slane %v233, 2
        %v235 = vmax.f32 %v233, %v234
        %v236 = vrot.slane %v235, 1
        %v237 = vmax.f32 %v235, %v236
        %v238 = vsel %vm230, %v228, -inf
        %v239 = vrot.slane %v238, 4
        %v240 = vmax.f32 %v238, %v239
        %v241 = vrot.slane %v240, 2
        %v242 = vmax.f32 %v240, %v241
        %v243 = vrot.slane %v242, 1
        %v244 = vmax.f32 %v242, %v243
        %v247 = vcombine.low %v237, %v244
        %v249 = vsub.f32 %v225, %v247
        %v250 = vmul.f32 %v249, 1.442695
        %v251 = vpow.pop %v250
        %v253 = vcombine.high %v251, %v251
        %v255 = vsel %vm230, %v251, 0.0
        %v256 = vrot.slane %v255, 4
        %v257 = vadd.f32 %v255, %v256
        %v258 = vrot.slane %v257, 2
        %v259 = vadd.f32 %v257, %v258
        %v260 = vrot.slane %v259, 1
        %v261 = vadd.f32 %v259, %v260
        %v262 = vsel %vm230, %v253, 0.0
        %v263 = vrot.slane %v262, 4
        %v264 = vadd.f32 %v262, %v263
        %v265 = vrot.slane %v264, 2
        %v266 = vadd.f32 %v264, %v265
        %v267 = vrot.slane %v266, 1
        %v268 = vadd.f32 %v266, %v267
        %v269 = vrcp.pop %v261
        %v270 = vmul.f32 1.0, %v269
        %v271 = vrcp.pop %v268
        %v272 = vmul.f32 1.0, %v271
        %v275 = vcombine.low %v270, %v272
        %v277 = vmul.f32 %v251, %v275
        %v278 = vlaneseq
        %v279 = vshrl.u32 %v278, 7
        %v280 = vlaneseq
        %v281 = vshrl.u32 %v280, 7
        %v282 = vsub.s32 0, %v281
        %v283 = vrot.slane %v226, %v282
        %v284 = vlaneseq
        %v285 = vshrl.u32 %v284, 7
        %v286 = vsub.s32 1, %v285
        %v287 = vrot.slane %v226, %v286
        %vm288 = vcmp.eq.s32.totalorder %v279, %v283
        %vm289 = vcmp.eq.s32.totalorder %v279, %v287
        %v290 = vsel %vm288, 1, 0
        %v291 = vsel %vm289, 1, 0
        %v292 = vcvt.s32.f32 %v290
        %v293 = vcvt.s32.f32 %v291
        %v296 = vcombine.low %v292, %v293
        %v298 = vsub.f32 %v277, %v296
        %v299 = vmul.f32 %v298, %v298
        %v300 = vsub.f32 1.00001, %v299
        %v301 = vlog2.pop %v300
        %v302 = vmul.f32 %v301, 0.6931472
        %v304 = vcombine.high %v302, %v302
        %v306 = vsel %vm230, %v302, 0.0
        %v307 = vrot.slane %v306, 4
        %v308 = vadd.f32 %v306, %v307
        %v309 = vrot.slane %v308, 2
        %v310 = vadd.f32 %v308, %v309
        %v311 = vrot.slane %v310, 1
        %v312 = vadd.f32 %v310, %v311
        %v313 = vsel %vm230, %v304, 0.0
        %v314 = vrot.slane %v313, 4
        %v315 = vadd.f32 %v313, %v314
        %v316 = vrot.slane %v315, 2
        %v317 = vadd.f32 %v315, %v316
        %v318 = vrot.slane %v317, 1
        %v319 = vadd.f32 %v317, %v318
        %v320 = vsub.f32 0.0, %v312
        %v321 = vsub.f32 0.0, %v319
        %vm322 = vcmp.ne.s32.totalorder %v226, 255
        %v325 = vcombine.low %v320, %v321
        %v327 = vunpack.c.l.s4 1966171168
        %v328 = vunpack.c.0.s8 %v327
        %v329 = vlaneseq
        %v330 = vshrl.u32 %v329, 7
        %v331 = vsub.s32 %v328, %v330
        %v332 = vrot.slane %v325, %v331
        %v334 = vunpack.c.l.s4 1966171168
        %v335 = vunpack.c.0.s8 %v334
        %v336 = vlaneseq
        %v337 = vshrl.u32 %v336, 7
        %v338 = vsub.s32 %v335, %v337
        %v339 = vrot.slane %v332, %v338
        %v341 = vsel %vm322, %v339, 0.0
        %v342 = vld [vmem:[#allocation2] ss:$2 sm:$0x3]
        %v343 = vadd.f32 %v342, %v341
        %v344 = vlaneseq
        %vm345 = vcmp.ge.s32.totalorder %v344, 0
        %vm346 = vcmp.lt.s32.totalorder %v344, 256
        %vm347 = vmand %vm345, %vm346
        %348 = vst.msk [vmem:[#allocation2] ss:$2 sm:$0x3] %vm347, %v343
        %s349 = scalar_lea.vmem [#allocation2], 1
        %v350 = vld [vmem:[%s349] ss:$2 sm:$0x3]
        %v351 = vsel %vm322, 1, 0
        %v352 = vcvt.s32.f32 %v351
        %v353 = vadd.f32 %v350, %v352
        %354 = vst.msk [vmem:[%s349] ss:$2 sm:$0x3] %vm347, %v353
        // Predicated region
        $region41: #{tpu_custom_call.1} parent=27 // pred_check
          %p355 = pneg %p220
        $region42: #{tpu_custom_call.1} parent=27 // pred_check_branch
          %357 = sbr.rel (%p355) target = $region44
        $region43: #{tpu_custom_call.1} parent=27 // pred_region
          %v358 = vld [vmem:[#allocation2] sm:$0xf]
          %v360 = vrot.slane %v358, 2
          %v362 = vadd.f32 %v358, %v360
          %363 = vst [vmem:[%s217] sm:$0x3] %v362
        $region44: #{tpu_custom_call.1} parent=27 // pred_fallthru
          _
        %s364 = sand.u32 %s98, 1
        %s365 = scalar_lea.sflag [#allocation5], %s364
        %s366 = sand.u32 %s98, 1
        %s367 = smul.addr %s366, 2
        %s368 = scalar_lea.vmem [#allocation8], %s367
        // Predicated region
        $region45: #{tpu_custom_call.1} parent=27 // pred_check
          %p369 = pneg %p108
        $region46: #{tpu_custom_call.1} parent=27 // pred_check_branch
          %371 = sbr.rel (%p369) target = $region48
        $region47: #{tpu_custom_call.1} parent=27 // pred_region
          %s373 = ssub.s32 32, 32
          %374 = vsyncadd %s365, %s373
          %s375 = smul.addr %s26, 32
          %s376 = scalar_lea.hbm %s2, %s375
          %s378 = sshll.u32 %s368, 4
          %s379 = int_to_ptr.vmem [resolvable:$true] %s378
          %381 = dma.vmem_to_hbm [thread:$0]  %s379, 32, %s376, %s365
        $region48: #{tpu_custom_call.1} parent=27 // pred_fallthru
          _
      $region28: #{tpu_custom_call.1} parent=5 // pred_fallthru
        _
      %p382 = scmp.le.s32.totalorder 2, %s17
      // Predicated region
      $region49: #{tpu_custom_call.1} parent=5 // pred_check
        %p383 = pneg %p382
      $region50: #{tpu_custom_call.1} parent=5 // pred_check_branch
        %385 = sbr.rel (%p383) target = $region52
      $region51: #{tpu_custom_call.1} parent=5 // pred_region
        %s386 = ssub.s32 %s17, 2
        // Predicated region
        $region53: #{tpu_custom_call.1} parent=51 // pred_check
          %p387 = pneg %p114
        $region54: #{tpu_custom_call.1} parent=51 // pred_check_branch
          %389 = sbr.rel (%p387) target = $region56
        $region55: #{tpu_custom_call.1} parent=51 // pred_region
          %s390 = sand.u32 %s99, 1
          %s391 = scalar_lea.sflag [#allocation5], %s390
          %s392 = sand.u32 %s99, 1
          %s393 = smul.addr %s392, 2
          %s394 = scalar_lea.vmem [#allocation8], %s393
          %395 = dma.done %s391, 32
        $region56: #{tpu_custom_call.1} parent=51 // pred_fallthru
          _
      $region52: #{tpu_custom_call.1} parent=5 // pred_fallthru
        _
    $region6: #{tpu_custom_call.1} parent=1 // loop_footer
      %s21 = sadd.s32 1, %s17
    $region7: #{tpu_custom_call.1} parent=1 // loop_footer_branch
      %16 = sbr.rel target = $region3
    $region8: #{tpu_custom_call.1} parent=1 // loop_exit
      _
    %396 = vsyncpa [#allocation4], 1
    %s397 = scalar_lea.sflag [#allocation4], 1
    %398 = vsyncpa %s397, 1
    %399 = vsyncpa [#allocation7], 1
    %s400 = scalar_lea.sflag [#allocation7], 1
    %401 = vsyncpa %s400, 1
    %402 = vsyncpa [#allocation5], 1
    %s403 = scalar_lea.sflag [#allocation5], 1
    %404 = vsyncpa %s403, 1

</llo_original>
